<compile_context>
chip_gen: v7x
topology: tpu7x:2x2x1
jax: 0.10.0
libtpu: 0.0.40
codegen_flags: <defaults>
</compile_context>

<pallas_src>
import functools
import math

import numpy as np
import jax
import jax.numpy as jnp
from jax.experimental import pallas as pl
from jax.experimental.pallas import tpu as pltpu

EPS = 0.01          # epsilon of func_rho_torch
EPS2 = EPS * EPS


def _ntg_kernel(img1_ref, img2_ref, out_ref,
                num_acc, den_acc, mr_ref, ml_ref, mt_ref, mb_ref,
                *, img_h, img_w):
    s = pl.program_id(1)                       # step along the 'arbitrary' axis

    x1 = img1_ref[...].astype(jnp.float32)     # (TR, PW)
    x2 = img2_ref[...].astype(jnp.float32)
    tr, pw = x1.shape

    # Hoisted mask build: once per partition (s == 0), stored in VMEM scratch.
    # Lanes hold P images of width img_w packed side by side; rows hold groups
    # of img_h image rows stacked, so (lane % W, row % H) give within-image
    # coordinates.  Masks reproduce zero padding and kill roll wrap-around.
    @pl.when(s == 0)
    def _init():
        num_acc[...] = jnp.zeros_like(num_acc)
        den_acc[...] = jnp.zeros_like(den_acc)
        col = jax.lax.broadcasted_iota(jnp.int32, (tr, pw), 1) % img_w
        row = jax.lax.broadcasted_iota(jnp.int32, (tr, pw), 0) % img_h
        mr_ref[...] = (col != img_w - 1).astype(jnp.float32)
        ml_ref[...] = (col != 0).astype(jnp.float32)
        mt_ref[...] = (row != 0).astype(jnp.float32)
        mb_ref[...] = (row != img_h - 1).astype(jnp.float32)

    mr = mr_ref[...]
    ml = ml_ref[...]
    mt = mt_ref[...]
    mb = mb_ref[...]

    def grads(x):
        # pltpu.roll == jnp.roll semantics; positive shifts only.
        r = pltpu.roll(x, pw - 1, 1) * mr      # x[i, j+1]
        l = pltpu.roll(x, 1, 1) * ml           # x[i, j-1]
        t = pltpu.roll(x, 1, 0) * mt           # x[i-1, j]
        b = pltpu.roll(x, tr - 1, 0) * mb      # x[i+1, j]
        return r - l, t - b                    # (xgrad, ygrad)

    g1x, g1y = grads(x1)
    g2x, g2y = grads(x2)

    eps2 = jnp.float32(EPS2)
    rho = lambda v: jnp.sqrt(v * v + eps2)     # elementwise part of func_rho(.,0)

    num_map = rho(g1x - g2x) + rho(g1y - g2y)                      # -> m1
    den_map = rho(g1x) + rho(g2x) + rho(g1y) + rho(g2y)            # -> n1

    # Fold into small accumulators with pure vreg adds (no XLU in steady state).
    if num_acc.shape[0] != tr:
        num_acc[...] += num_map.reshape(tr // 8, 8, pw).sum(axis=0)
        den_acc[...] += den_map.reshape(tr // 8, 8, pw).sum(axis=0)
    else:                                      # fallback: full-tile accumulators
        num_acc[...] += num_map
        den_acc[...] += den_map

    @pl.when(s == pl.num_programs(1) - 1)
    def _finalize():
        num_p = jnp.sum(num_acc[...])
        den_p = jnp.sum(den_acc[...])
        rows = jax.lax.broadcasted_iota(jnp.int32, (8, 128), 0)
        slab = jnp.where(rows == 0, num_p,
                         jnp.where(rows == 1, den_p, jnp.float32(0.0)))
        out_ref[...] = slab.reshape(1, 8, 128)


def ntg_loss(img1, img2, *, lane_target=512,
             vmem_budget_bytes=20 * 1024 * 1024, num_partitions=2):
    """Pallas implementation of NTGLoss.forward(img1, img2) -> scalar."""
    assert img1.shape == img2.shape and img1.ndim == 4
    N, C, H, W = img1.shape
    M = N * C

    # ---- lane packing: pack P images side by side so lanes are ~full -------
    if W >= 128:
        P = 1
    else:
        q = 128 // math.gcd(W, 128)            # smallest P with P*W % 128 == 0
        n_groups = max(1, min(lane_target // (q * W), max(1, M // q)))
        P = q * n_groups
    M_pad = -(-M // P) * P
    n_pad = M_pad - M                          # all-zero padding images
    G = M_pad // P                             # packed groups
    PW = P * W

    def prep(x):
        x = x.reshape(M, H, W)
        if n_pad:
            x = jnp.concatenate(
                [x, jnp.zeros((n_pad, H, W), dtype=x.dtype)], axis=0)
        if P == 1:
            return x.reshape(G * H, W)         # pure reshape, no copy
        # TODO(synk): fuse this lane-pack transpose into the kernel (per-tile
        # relayout) to drop the extra HBM pass for W < 128 inputs.
        return (x.reshape(G, P, H, W)
                 .transpose(0, 2, 1, 3)
                 .reshape(G * H, PW))

    x1 = prep(img1)
    x2 = prep(img2)

    # ---- block sizing (actual itemsize; masks counted in the budget) -------
    itemsize = jnp.dtype(img1.dtype).itemsize
    per_group = H * PW * (4 * itemsize + 4 * 4)  # 2 in x 2 bufs + 4 f32 masks
    cap = max(1, vmem_budget_bytes // per_group)
    divs = [d for d in range(1, min(G, cap) + 1) if G % d == 0]
    good = [d for d in divs if (d * H) % 8 == 0]
    B = max(good) if good else max(divs)       # never exceeds the VMEM cap
    TR = B * H
    NB = G // B                                # total row-blocks

    # ---- shard row-blocks across a 'parallel' axis (uses both v7x TCs) -----
    NPART = 1
    for cand in range(min(num_partitions, NB), 0, -1):
        if NB % cand == 0:
            NPART = cand
            break
    S = NB // NPART                            # steps per partition

    acc_rows = 8 if TR % 8 == 0 else TR

    kernel = functools.partial(_ntg_kernel, img_h=H, img_w=W)
    partials = pl.pallas_call(
        kernel,
        out_shape=jax.ShapeDtypeStruct((NPART, 8, 128), jnp.float32),
        grid_spec=pltpu.PrefetchScalarGridSpec(
            num_scalar_prefetch=0,
            grid=(NPART, S),
            in_specs=[
                pl.BlockSpec((TR, PW), lambda p, s: (p * S + s, 0)),
                pl.BlockSpec((TR, PW), lambda p, s: (p * S + s, 0)),
            ],
            out_specs=pl.BlockSpec((1, 8, 128), lambda p, s: (p, 0, 0)),
            scratch_shapes=[
                pltpu.VMEM((acc_rows, PW), jnp.float32),   # numerator acc
                pltpu.VMEM((acc_rows, PW), jnp.float32),   # denominator acc
                pltpu.VMEM((TR, PW), jnp.float32),         # keep_r mask
                pltpu.VMEM((TR, PW), jnp.float32),         # keep_l mask
                pltpu.VMEM((TR, PW), jnp.float32),         # keep_t mask
                pltpu.VMEM((TR, PW), jnp.float32),         # keep_b mask
            ],
        ),
        compiler_params=pltpu.CompilerParams(
            dimension_semantics=("parallel", "arbitrary"),
            vmem_limit_bytes=32 * 1024 * 1024,
        ),
    )(x1, x2)

    num = jnp.sum(partials[:, 0, 0])
    den = jnp.sum(partials[:, 1, 0])
    if n_pad:
        # All-zero padding images contribute exactly rho(0) = eps per element:
        # 2*eps to the numerator map and 4*eps to the denominator map.
        pad_elems = jnp.float32(n_pad * H * W)
        pad_rho = jnp.sqrt(jnp.float32(EPS2))
        num = num - 2.0 * pad_rho * pad_elems
        den = den - 4.0 * pad_rho * pad_elems
    return num / (den + jnp.float32(1e-16))


def ntg_loss_ref(img1, img2):
    """Pure-JAX reference mirroring compute_ntg_pytorch."""
    def grads(x):
        H, W = x.shape[2], x.shape[3]
        r = jnp.pad(x, ((0, 0), (0, 0), (0, 0), (0, 1)))[..., 1:]
        l = jnp.pad(x, ((0, 0), (0, 0), (0, 0), (1, 0)))[..., :W]
        t = jnp.pad(x, ((0, 0), (0, 0), (1, 0), (0, 0)))[..., :H, :]
        b = jnp.pad(x, ((0, 0), (0, 0), (0, 1), (0, 0)))[..., 1:, :]
        return r - l, t - b

    g1x, g1y = grads(img1)
    g2x, g2y = grads(img2)
    rho0 = lambda v: jnp.sum(jnp.sqrt(v * v + jnp.float32(EPS2)))
    m1 = rho0(g1x - g2x) + rho0(g1y - g2y)
    n1 = rho0(g1x) + rho0(g2x) + rho0(g1y) + rho0(g2y)
    return m1 / (n1 + 1e-16)


if __name__ == "__main__":
    key = jax.random.PRNGKey(0)
    k1, k2 = jax.random.split(key)
    # NCHW inputs, like the PyTorch module expects.
    img1 = jax.random.uniform(k1, (2, 4, 16, 16), dtype=jnp.float32)
    img2 = jax.random.uniform(k2, (2, 4, 16, 16), dtype=jnp.float32)

    loss = ntg_loss(img1, img2)
    jax.block_until_ready(loss)

    ref = ntg_loss_ref(img1, img2)
    np.testing.assert_allclose(np.asarray(loss), np.asarray(ref),
                               rtol=1e-5, atol=1e-6)
    print("KERNEL_OK")
</pallas_src>

<mosaic_0001>
module attributes {stable_mosaic.version = 11 : i64} {
  func.func @_ntg_kernel(%arg0: i32, %arg1: i32, %arg2: memref<16x128xf32, #tpu.memory_space<vmem>>, %arg3: memref<16x128xf32, #tpu.memory_space<vmem>>, %arg4: memref<1x8x128xf32, #tpu.memory_space<vmem>>, %arg5: memref<8x128xf32, #tpu.memory_space<vmem>>, %arg6: memref<8x128xf32, #tpu.memory_space<vmem>>, %arg7: memref<16x128xf32, #tpu.memory_space<vmem>>, %arg8: memref<16x128xf32, #tpu.memory_space<vmem>>, %arg9: memref<16x128xf32, #tpu.memory_space<vmem>>, %arg10: memref<16x128xf32, #tpu.memory_space<vmem>>) attributes {dimension_semantics = [#tpu.dimension_semantics<parallel>, #tpu.dimension_semantics<arbitrary>], iteration_bounds = array<i64: 1, 1>, scalar_prefetch = 0 : i64, scratch_operands = 6 : i64, tpu.core_type = #tpu.core_type<tc>, window_params = [{transform_indices = @transform_0, window_bounds = array<i64: 16, 128>}, {transform_indices = @transform_1, window_bounds = array<i64: 16, 128>}, {transform_indices = @transform_2, window_bounds = array<i64: 1, 8, 128>}]} {
    %c0 = arith.constant 0 : index
    %c0_0 = arith.constant 0 : index
    %0 = vector.load %arg2[%c0, %c0_0] : memref<16x128xf32, #tpu.memory_space<vmem>>, vector<16x128xf32>
    %c0_1 = arith.constant 0 : index
    %c0_2 = arith.constant 0 : index
    %1 = vector.load %arg3[%c0_1, %c0_2] : memref<16x128xf32, #tpu.memory_space<vmem>>, vector<16x128xf32>
    %c0_i32 = arith.constant 0 : i32
    %2 = arith.cmpi eq, %arg1, %c0_i32 : i32
    %3 = arith.extui %2 : i1 to i32
    %c0_i32_3 = arith.constant 0 : i32
    %4 = arith.cmpi ne, %3, %c0_i32_3 : i32
    scf.if %4 {
      %cst_34 = arith.constant 0.000000e+00 : f32
      %72 = vector.broadcast %cst_34 : f32 to vector<8x128xf32>
      %c0_35 = arith.constant 0 : index
      %c0_36 = arith.constant 0 : index
      %73 = vector.load %arg5[%c0_35, %c0_36] : memref<8x128xf32, #tpu.memory_space<vmem>>, vector<8x128xf32>
      tpu.vector_store %arg5[%c0_35, %c0_36], %72 {strides = array<i32>} : memref<8x128xf32, #tpu.memory_space<vmem>>, vector<8x128xf32>,
      %cst_37 = arith.constant 0.000000e+00 : f32
      %74 = vector.broadcast %cst_37 : f32 to vector<8x128xf32>
      %c0_38 = arith.constant 0 : index
      %c0_39 = arith.constant 0 : index
      %75 = vector.load %arg6[%c0_38, %c0_39] : memref<8x128xf32, #tpu.memory_space<vmem>>, vector<8x128xf32>
      tpu.vector_store %arg6[%c0_38, %c0_39], %74 {strides = array<i32>} : memref<8x128xf32, #tpu.memory_space<vmem>>, vector<8x128xf32>,
      %76 = tpu.iota {dimensions = array<i32: 1>} : vector<16x128xi32>
      %c16_i32 = arith.constant 16 : i32
      %c0_i32_40 = arith.constant 0 : i32
      %77 = arith.cmpi eq, %c16_i32, %c0_i32_40 : i32
      %c1_i32_41 = arith.constant 1 : i32
      %78 = arith.select %77, %c1_i32_41, %c16_i32 : i32
      %79 = vector.broadcast %78 : i32 to vector<16x128xi32>
      %80 = arith.remsi %76, %79 : vector<16x128xi32>
      %c0_i32_42 = arith.constant 0 : i32
      %81 = vector.broadcast %c0_i32_42 : i32 to vector<16x128xi32>
      %82 = arith.cmpi ne, %80, %81 : vector<16x128xi32>
      %c0_i32_43 = arith.constant 0 : i32
      %83 = vector.broadcast %c0_i32_43 : i32 to vector<16x128xi32>
      %84 = arith.cmpi slt, %80, %83 : vector<16x128xi32>
      %c0_i32_44 = arith.constant 0 : i32
      %85 = arith.cmpi slt, %78, %c0_i32_44 : i32
      %86 = vector.broadcast %85 : i1 to vector<16x128xi1>
      %87 = vector.broadcast %86 : vector<16x128xi1> to vector<16x128xi1>
      %88 = arith.xori %84, %87 : vector<16x128xi1>
      %89 = arith.andi %88, %82 : vector<16x128xi1>
      %90 = vector.broadcast %78 : i32 to vector<16x128xi32>
      %91 = arith.addi %80, %90 : vector<16x128xi32>
      %92 = arith.select %89, %91, %80 : vector<16x128xi1>, vector<16x128xi32>
      %93 = tpu.iota {dimensions = array<i32: 0>} : vector<16x128xi32>
      %c16_i32_45 = arith.constant 16 : i32
      %c0_i32_46 = arith.constant 0 : i32
      %94 = arith.cmpi eq, %c16_i32_45, %c0_i32_46 : i32
      %c1_i32_47 = arith.constant 1 : i32
      %95 = arith.select %94, %c1_i32_47, %c16_i32_45 : i32
      %96 = vector.broadcast %95 : i32 to vector<16x128xi32>
      %97 = arith.remsi %93, %96 : vector<16x128xi32>
      %c0_i32_48 = arith.constant 0 : i32
      %98 = vector.broadcast %c0_i32_48 : i32 to vector<16x128xi32>
      %99 = arith.cmpi ne, %97, %98 : vector<16x128xi32>
      %c0_i32_49 = arith.constant 0 : i32
      %100 = vector.broadcast %c0_i32_49 : i32 to vector<16x128xi32>
      %101 = arith.cmpi slt, %97, %100 : vector<16x128xi32>
      %c0_i32_50 = arith.constant 0 : i32
      %102 = arith.cmpi slt, %95, %c0_i32_50 : i32
      %103 = vector.broadcast %102 : i1 to vector<16x128xi1>
      %104 = vector.broadcast %103 : vector<16x128xi1> to vector<16x128xi1>
      %105 = arith.xori %101, %104 : vector<16x128xi1>
      %106 = arith.andi %105, %99 : vector<16x128xi1>
      %107 = vector.broadcast %95 : i32 to vector<16x128xi32>
      %108 = arith.addi %97, %107 : vector<16x128xi32>
      %109 = arith.select %106, %108, %97 : vector<16x128xi1>, vector<16x128xi32>
      %c15_i32_51 = arith.constant 15 : i32
      %110 = vector.broadcast %c15_i32_51 : i32 to vector<16x128xi32>
      %111 = arith.cmpi ne, %92, %110 : vector<16x128xi32>
      %112 = arith.extui %111 : vector<16x128xi1> to vector<16x128xi32>
      %113 = arith.sitofp %112 : vector<16x128xi32> to vector<16x128xf32>
      %c0_52 = arith.constant 0 : index
      %c0_53 = arith.constant 0 : index
      %114 = vector.load %arg7[%c0_52, %c0_53] : memref<16x128xf32, #tpu.memory_space<vmem>>, vector<16x128xf32>
      tpu.vector_store %arg7[%c0_52, %c0_53], %113 {strides = array<i32>} : memref<16x128xf32, #tpu.memory_space<vmem>>, vector<16x128xf32>,
      %c0_i32_54 = arith.constant 0 : i32
      %115 = vector.broadcast %c0_i32_54 : i32 to vector<16x128xi32>
      %116 = arith.cmpi ne, %92, %115 : vector<16x128xi32>
      %117 = arith.extui %116 : vector<16x128xi1> to vector<16x128xi32>
      %118 = arith.sitofp %117 : vector<16x128xi32> to vector<16x128xf32>
      %c0_55 = arith.constant 0 : index
      %c0_56 = arith.constant 0 : index
      %119 = vector.load %arg8[%c0_55, %c0_56] : memref<16x128xf32, #tpu.memory_space<vmem>>, vector<16x128xf32>
      tpu.vector_store %arg8[%c0_55, %c0_56], %118 {strides = array<i32>} : memref<16x128xf32, #tpu.memory_space<vmem>>, vector<16x128xf32>,
      %c0_i32_57 = arith.constant 0 : i32
      %120 = vector.broadcast %c0_i32_57 : i32 to vector<16x128xi32>
      %121 = arith.cmpi ne, %109, %120 : vector<16x128xi32>
      %122 = arith.extui %121 : vector<16x128xi1> to vector<16x128xi32>
      %123 = arith.sitofp %122 : vector<16x128xi32> to vector<16x128xf32>
      %c0_58 = arith.constant 0 : index
      %c0_59 = arith.constant 0 : index
      %124 = vector.load %arg9[%c0_58, %c0_59] : memref<16x128xf32, #tpu.memory_space<vmem>>, vector<16x128xf32>
      tpu.vector_store %arg9[%c0_58, %c0_59], %123 {strides = array<i32>} : memref<16x128xf32, #tpu.memory_space<vmem>>, vector<16x128xf32>,
      %c15_i32_60 = arith.constant 15 : i32
      %125 = vector.broadcast %c15_i32_60 : i32 to vector<16x128xi32>
      %126 = arith.cmpi ne, %109, %125 : vector<16x128xi32>
      %127 = arith.extui %126 : vector<16x128xi1> to vector<16x128xi32>
      %128 = arith.sitofp %127 : vector<16x128xi32> to vector<16x128xf32>
      %c0_61 = arith.constant 0 : index
      %c0_62 = arith.constant 0 : index
      %129 = vector.load %arg10[%c0_61, %c0_62] : memref<16x128xf32, #tpu.memory_space<vmem>>, vector<16x128xf32>
      tpu.vector_store %arg10[%c0_61, %c0_62], %128 {strides = array<i32>} : memref<16x128xf32, #tpu.memory_space<vmem>>, vector<16x128xf32>,
    } else {
    }
    %c0_4 = arith.constant 0 : index
    %c0_5 = arith.constant 0 : index
    %5 = vector.load %arg7[%c0_4, %c0_5] : memref<16x128xf32, #tpu.memory_space<vmem>>, vector<16x128xf32>
    %c0_6 = arith.constant 0 : index
    %c0_7 = arith.constant 0 : index
    %6 = vector.load %arg8[%c0_6, %c0_7] : memref<16x128xf32, #tpu.memory_space<vmem>>, vector<16x128xf32>
    %c0_8 = arith.constant 0 : index
    %c0_9 = arith.constant 0 : index
    %7 = vector.load %arg9[%c0_8, %c0_9] : memref<16x128xf32, #tpu.memory_space<vmem>>, vector<16x128xf32>
    %c0_10 = arith.constant 0 : index
    %c0_11 = arith.constant 0 : index
    %8 = vector.load %arg10[%c0_10, %c0_11] : memref<16x128xf32, #tpu.memory_space<vmem>>, vector<16x128xf32>
    %c127_i32 = arith.constant 127 : i32
    %9 = tpu.dynamic_rotate %0 by %c127_i32 dim 1 : vector<16x128xf32>, i32 -> vector<16x128xf32>
    %10 = arith.mulf %9, %5 : vector<16x128xf32>
    %c1_i32 = arith.constant 1 : i32
    %11 = tpu.dynamic_rotate %0 by %c1_i32 dim 1 : vector<16x128xf32>, i32 -> vector<16x128xf32>
    %12 = arith.mulf %11, %6 : vector<16x128xf32>
    %c1_i32_12 = arith.constant 1 : i32
    %13 = tpu.dynamic_rotate %0 by %c1_i32_12 dim 0 : vector<16x128xf32>, i32 -> vector<16x128xf32>
    %14 = arith.mulf %13, %7 : vector<16x128xf32>
    %c15_i32 = arith.constant 15 : i32
    %15 = tpu.dynamic_rotate %0 by %c15_i32 dim 0 : vector<16x128xf32>, i32 -> vector<16x128xf32>
    %16 = arith.mulf %15, %8 : vector<16x128xf32>
    %17 = arith.subf %10, %12 : vector<16x128xf32>
    %18 = arith.subf %14, %16 : vector<16x128xf32>
    %c127_i32_13 = arith.constant 127 : i32
    %19 = tpu.dynamic_rotate %1 by %c127_i32_13 dim 1 : vector<16x128xf32>, i32 -> vector<16x128xf32>
    %20 = arith.mulf %19, %5 : vector<16x128xf32>
    %c1_i32_14 = arith.constant 1 : i32
    %21 = tpu.dynamic_rotate %1 by %c1_i32_14 dim 1 : vector<16x128xf32>, i32 -> vector<16x128xf32>
    %22 = arith.mulf %21, %6 : vector<16x128xf32>
    %c1_i32_15 = arith.constant 1 : i32
    %23 = tpu.dynamic_rotate %1 by %c1_i32_15 dim 0 : vector<16x128xf32>, i32 -> vector<16x128xf32>
    %24 = arith.mulf %23, %7 : vector<16x128xf32>
    %c15_i32_16 = arith.constant 15 : i32
    %25 = tpu.dynamic_rotate %1 by %c15_i32_16 dim 0 : vector<16x128xf32>, i32 -> vector<16x128xf32>
    %26 = arith.mulf %25, %8 : vector<16x128xf32>
    %27 = arith.subf %20, %22 : vector<16x128xf32>
    %28 = arith.subf %24, %26 : vector<16x128xf32>
    %29 = arith.subf %17, %27 : vector<16x128xf32>
    %30 = arith.mulf %29, %29 : vector<16x128xf32>
    %cst = arith.constant 9.99999974E-5 : f32
    %31 = vector.broadcast %cst : f32 to vector<16x128xf32>
    %32 = arith.addf %30, %31 : vector<16x128xf32>
    %33 = math.sqrt %32 : vector<16x128xf32>
    %34 = arith.subf %18, %28 : vector<16x128xf32>
    %35 = arith.mulf %34, %34 : vector<16x128xf32>
    %cst_17 = arith.constant 9.99999974E-5 : f32
    %36 = vector.broadcast %cst_17 : f32 to vector<16x128xf32>
    %37 = arith.addf %35, %36 : vector<16x128xf32>
    %38 = math.sqrt %37 : vector<16x128xf32>
    %39 = arith.addf %33, %38 : vector<16x128xf32>
    %40 = arith.mulf %17, %17 : vector<16x128xf32>
    %cst_18 = arith.constant 9.99999974E-5 : f32
    %41 = vector.broadcast %cst_18 : f32 to vector<16x128xf32>
    %42 = arith.addf %40, %41 : vector<16x128xf32>
    %43 = math.sqrt %42 : vector<16x128xf32>
    %44 = arith.mulf %27, %27 : vector<16x128xf32>
    %cst_19 = arith.constant 9.99999974E-5 : f32
    %45 = vector.broadcast %cst_19 : f32 to vector<16x128xf32>
    %46 = arith.addf %44, %45 : vector<16x128xf32>
    %47 = math.sqrt %46 : vector<16x128xf32>
    %48 = arith.addf %43, %47 : vector<16x128xf32>
    %49 = arith.mulf %18, %18 : vector<16x128xf32>
    %cst_20 = arith.constant 9.99999974E-5 : f32
    %50 = vector.broadcast %cst_20 : f32 to vector<16x128xf32>
    %51 = arith.addf %49, %50 : vector<16x128xf32>
    %52 = math.sqrt %51 : vector<16x128xf32>
    %53 = arith.addf %48, %52 : vector<16x128xf32>
    %54 = arith.mulf %28, %28 : vector<16x128xf32>
    %cst_21 = arith.constant 9.99999974E-5 : f32
    %55 = vector.broadcast %cst_21 : f32 to vector<16x128xf32>
    %56 = arith.addf %54, %55 : vector<16x128xf32>
    %57 = math.sqrt %56 : vector<16x128xf32>
    %58 = arith.addf %53, %57 : vector<16x128xf32>
    %c0_22 = arith.constant 0 : index
    %c0_23 = arith.constant 0 : index
    %59 = vector.load %arg5[%c0_22, %c0_23] : memref<8x128xf32, #tpu.memory_space<vmem>>, vector<8x128xf32>
    %60 = vector.shape_cast %39 : vector<16x128xf32> to vector<2x8x128xf32>
    %cst_24 = arith.constant dense<0.000000e+00> : vector<8x128xf32>
    %61 = vector.multi_reduction <add>, %60, %cst_24 [0] : vector<2x8x128xf32> to vector<8x128xf32>
    %62 = arith.addf %59, %61 : vector<8x128xf32>
    %c0_25 = arith.constant 0 : index
    %c0_26 = arith.constant 0 : index
    %63 = vector.load %arg5[%c0_25, %c0_26] : memref<8x128xf32, #tpu.memory_space<vmem>>, vector<8x128xf32>
    tpu.vector_store %arg5[%c0_25, %c0_26], %62 {strides = array<i32>} : memref<8x128xf32, #tpu.memory_space<vmem>>, vector<8x128xf32>,
    %c0_27 = arith.constant 0 : index
    %c0_28 = arith.constant 0 : index
    %64 = vector.load %arg6[%c0_27, %c0_28] : memref<8x128xf32, #tpu.memory_space<vmem>>, vector<8x128xf32>
    %65 = vector.shape_cast %58 : vector<16x128xf32> to vector<2x8x128xf32>
    %cst_29 = arith.constant dense<0.000000e+00> : vector<8x128xf32>
    %66 = vector.multi_reduction <add>, %65, %cst_29 [0] : vector<2x8x128xf32> to vector<8x128xf32>
    %67 = arith.addf %64, %66 : vector<8x128xf32>
    %c0_30 = arith.constant 0 : index
    %c0_31 = arith.constant 0 : index
    %68 = vector.load %arg6[%c0_30, %c0_31] : memref<8x128xf32, #tpu.memory_space<vmem>>, vector<8x128xf32>
    tpu.vector_store %arg6[%c0_30, %c0_31], %67 {strides = array<i32>} : memref<8x128xf32, #tpu.memory_space<vmem>>, vector<8x128xf32>,
    %c0_i32_32 = arith.constant 0 : i32
    %69 = arith.cmpi eq, %arg1, %c0_i32_32 : i32
    %70 = arith.extui %69 : i1 to i32
    %c0_i32_33 = arith.constant 0 : i32
    %71 = arith.cmpi ne, %70, %c0_i32_33 : i32
    scf.if %71 {
      %c0_34 = arith.constant 0 : index
      %c0_35 = arith.constant 0 : index
      %72 = vector.load %arg5[%c0_34, %c0_35] : memref<8x128xf32, #tpu.memory_space<vmem>>, vector<8x128xf32>
      %73 = vector.shape_cast %72 : vector<8x128xf32> to vector<1x8x128xf32>
      %cst_36 = arith.constant dense<0.000000e+00> : vector<1xf32>
      %74 = vector.multi_reduction <add>, %73, %cst_36 [1, 2] : vector<1x8x128xf32> to vector<1xf32>
      %75 = vector.shape_cast %74 : vector<1xf32> to vector<1x1x1xf32>
      %76 = vector.extract %75[0, 0, 0] : f32 from vector<1x1x1xf32>
      %c0_37 = arith.constant 0 : index
      %c0_38 = arith.constant 0 : index
      %77 = vector.load %arg6[%c0_37, %c0_38] : memref<8x128xf32, #tpu.memory_space<vmem>>, vector<8x128xf32>
      %78 = vector.shape_cast %77 : vector<8x128xf32> to vector<1x8x128xf32>
      %cst_39 = arith.constant dense<0.000000e+00> : vector<1xf32>
      %79 = vector.multi_reduction <add>, %78, %cst_39 [1, 2] : vector<1x8x128xf32> to vector<1xf32>
      %80 = vector.shape_cast %79 : vector<1xf32> to vector<1x1x1xf32>
      %81 = vector.extract %80[0, 0, 0] : f32 from vector<1x1x1xf32>
      %82 = tpu.iota {dimensions = array<i32: 0>} : vector<8x128xi32>
      %c0_i32_40 = arith.constant 0 : i32
      %83 = vector.broadcast %c0_i32_40 : i32 to vector<8x128xi32>
      %84 = arith.cmpi eq, %82, %83 : vector<8x128xi32>
      %c1_i32_41 = arith.constant 1 : i32
      %85 = vector.broadcast %c1_i32_41 : i32 to vector<8x128xi32>
      %86 = arith.cmpi eq, %82, %85 : vector<8x128xi32>
      %cst_42 = arith.constant 0.000000e+00 : f32
      %87 = vector.broadcast %81 : f32 to vector<8x128xf32>
      %88 = vector.broadcast %cst_42 : f32 to vector<8x128xf32>
      %89 = arith.select %86, %87, %88 : vector<8x128xi1>, vector<8x128xf32>
      %90 = vector.broadcast %76 : f32 to vector<8x128xf32>
      %91 = arith.select %84, %90, %89 : vector<8x128xi1>, vector<8x128xf32>
      %92 = vector.shape_cast %91 : vector<8x128xf32> to vector<1x8x128xf32>
      %c0_43 = arith.constant 0 : index
      %c0_44 = arith.constant 0 : index
      %c0_45 = arith.constant 0 : index
      %93 = vector.load %arg4[%c0_43, %c0_44, %c0_45] : memref<1x8x128xf32, #tpu.memory_space<vmem>>, vector<1x8x128xf32>
      tpu.vector_store %arg4[%c0_43, %c0_44, %c0_45], %92 {strides = array<i32>} : memref<1x8x128xf32, #tpu.memory_space<vmem>>, vector<1x8x128xf32>,
    } else {
    }
    return
  }
  func.func @transform_0(%arg0: i32, %arg1: i32) -> (i32, i32) {
    %c1_i32 = arith.constant 1 : i32
    %0 = arith.muli %arg0, %c1_i32 : i32
    %1 = arith.addi %0, %arg1 : i32
    %c0_i32 = arith.constant 0 : i32
    %c0_i32_0 = arith.constant 0 : i32
    return %1, %c0_i32 : i32, i32
  }
  func.func @transform_1(%arg0: i32, %arg1: i32) -> (i32, i32) {
    %c1_i32 = arith.constant 1 : i32
    %0 = arith.muli %arg0, %c1_i32 : i32
    %1 = arith.addi %0, %arg1 : i32
    %c0_i32 = arith.constant 0 : i32
    %c0_i32_0 = arith.constant 0 : i32
    return %1, %c0_i32 : i32, i32
  }
  func.func @transform_2(%arg0: i32, %arg1: i32) -> (i32, i32, i32) {
    %c0_i32 = arith.constant 0 : i32
    %c0_i32_0 = arith.constant 0 : i32
    %c0_i32_1 = arith.constant 0 : i32
    return %arg0, %c0_i32, %c0_i32_0 : i32, i32, i32
  }
}

</mosaic_0001>

<llo_original>
// kernel: tpu_custom_call.1
$region0: #{tpu_custom_call.1}
  #allocation0 [shape = 'u32[]', space=smem, size = 0x4, offset = 0x4, fixed_abs, tag = 'smem constant byte address 0x4 - core index']
  #allocation1 [shape = 'u32[144,128]{1,0:T(1,128)}', space=vmem, size = 0x12000, scoped, tag = 'internal scratch']
  #allocation2 [shape = 'f32[8,128]{1,0:T(8,128)}', space=vmem, size = 0x1000, scoped, tag = 'scratch operand']
  #allocation3 [shape = 'f32[8,128]{1,0:T(8,128)}', space=vmem, size = 0x1000, scoped, tag = 'scratch operand']
  #allocation4 [shape = 'f32[16,128]{1,0:T(8,128)}', space=vmem, size = 0x2000, scoped, tag = 'scratch operand']
  #allocation5 [shape = 'f32[16,128]{1,0:T(8,128)}', space=vmem, size = 0x2000, scoped, tag = 'scratch operand']
  #allocation6 [shape = 'f32[16,128]{1,0:T(8,128)}', space=vmem, size = 0x2000, scoped, tag = 'scratch operand']
  #allocation7 [shape = 'f32[16,128]{1,0:T(8,128)}', space=vmem, size = 0x2000, scoped, tag = 'scratch operand']
  %s0 = inlined_call_operand.hbm [shape: f32[16,128], index: 0, kind: input, shape index: {}]
  %s1 = inlined_call_operand.hbm [shape: f32[16,128], index: 1, kind: input, shape index: {}]
  %s2 = inlined_call_operand.hbm [shape: f32[1,8,128], index: 2, kind: output, shape index: {}]
  %s3 = sld [smem:[#allocation0]]
  $region34: #{tpu_custom_call.1} parent=0
    _
  %s5 = ssub.s32 1, %s3
  %s6 = scalar_select 0, %s5, %s3
  $region1: #{tpu_custom_call.1} parent=0
    #allocation8 [shape = 'u8[8192]{0}', space=vmem, size = 0x2000, scoped, tag = 'input window, operand 0, single buffered']
    #allocation9 [shape = 's32[1]{0}', space=sflag, size = 0x4, scoped, tag = 'scoped memory for tpu_custom_call.1']
    #allocation10 [shape = 's32[1]{0}', space=sflag, size = 0x4, scoped, tag = 'scoped memory for tpu_custom_call.1']
    #allocation11 [shape = 'u8[8192]{0}', space=vmem, size = 0x2000, scoped, tag = 'input window, operand 1, single buffered']
    #allocation12 [shape = 's32[1]{0}', space=sflag, size = 0x4, scoped, tag = 'scoped memory for tpu_custom_call.1']
    #allocation13 [shape = 'u8[4096]{0}', space=vmem, size = 0x1000, scoped, tag = 'output window, operand 0, single buffered']
    %7 = vsyncpa [#allocation9], 0
    %8 = vsyncpa [#allocation12], 0
    %9 = vsyncpa [#allocation10], 0
    // Predicated region
    $region2: #{tpu_custom_call.1} parent=1 // pred_check
      _
    $region3: #{tpu_custom_call.1} parent=1 // pred_check_branch
      %11 = sbr.rel (0) target = $region5
    $region4: #{tpu_custom_call.1} parent=1 // pred_region
      %s12 = sadd.s32 0, 0
      %s13 = smul.u32 2, %s12
      %s15 = ssub.s32 256, 256
      %16 = vsyncadd [#allocation9], %s15
      %s17 = smul.addr %s13, 128
      %s18 = scalar_lea.hbm %s0, %s17
      %s19 = sshll.u32 [#allocation8], 4
      %s20 = int_to_ptr.vmem [resolvable:$true] %s19
      %25 = dma.hbm_to_vmem [thread:$0]  %s18, 256, %s20, [#allocation9], 128, 128, 8
    $region5: #{tpu_custom_call.1} parent=1 // pred_fallthru
      _
    // Predicated region
    $region6: #{tpu_custom_call.1} parent=1 // pred_check
      _
    $region7: #{tpu_custom_call.1} parent=1 // pred_check_branch
      %27 = sbr.rel (0) target = $region9
    $region8: #{tpu_custom_call.1} parent=1 // pred_region
      %s28 = sadd.s32 0, 0
      %s29 = smul.u32 2, %s28
      %s31 = ssub.s32 256, 256
      %32 = vsyncadd [#allocation12], %s31
      %s33 = smul.addr %s29, 128
      %s34 = scalar_lea.hbm %s1, %s33
      %s35 = sshll.u32 [#allocation11], 4
      %s36 = int_to_ptr.vmem [resolvable:$true] %s35
      %41 = dma.hbm_to_vmem [thread:$0]  %s34, 256, %s36, [#allocation12], 128, 128, 8
    $region9: #{tpu_custom_call.1} parent=1 // pred_fallthru
      _
    // Predicated region
    $region10: #{tpu_custom_call.1} parent=1 // pred_check
      _
    $region11: #{tpu_custom_call.1} parent=1 // pred_check_branch
      %43 = sbr.rel (0) target = $region13
    $region12: #{tpu_custom_call.1} parent=1 // pred_region
      %44 = dma.done [#allocation9], 256
    $region13: #{tpu_custom_call.1} parent=1 // pred_fallthru
      _
    // Predicated region
    $region14: #{tpu_custom_call.1} parent=1 // pred_check
      _
    $region15: #{tpu_custom_call.1} parent=1 // pred_check_branch
      %46 = sbr.rel (0) target = $region17
    $region16: #{tpu_custom_call.1} parent=1 // pred_region
      %47 = dma.done [#allocation12], 256
    $region17: #{tpu_custom_call.1} parent=1 // pred_fallthru
      _
    %s48 = sadd.s32 0, 0
    %s49 = smul.u32 2, %s48
    %s50 = sadd.s32 0, 0
    %s51 = smul.u32 2, %s50
    %v52 = vld [vmem:[#allocation8] sm:$0xff]
    %v53 = vld [vmem:[#allocation8 + $0x8] sm:$0xff]
    %v54 = vld [vmem:[#allocation11] sm:$0xff]
    %v55 = vld [vmem:[#allocation11 + $0x8] sm:$0xff]
    %p56 = scmp.eq.s32.totalorder 0, 0
    // Predicated region
    $region18: #{tpu_custom_call.1} parent=1 // pred_check
      %p57 = pneg %p56
    $region19: #{tpu_custom_call.1} parent=1 // pred_check_branch
      %59 = sbr.rel (%p57) target = $region21
    $region20: #{tpu_custom_call.1} parent=1 // pred_region
      %60 = vst [vmem:[#allocation2] sm:$0xff] 0.0
      %61 = vst [vmem:[#allocation3] sm:$0xff] 0.0
      %v62 = vlaneseq
      %v63 = vand.u32 %v62, 127
      %vm64 = vcmp.lt.s32.totalorder %v63, 0
      %v65 = vsub.s32 0, %v63
      %v66 = vsel %vm64, %v65, %v63
      %v67 = vshrl.u32 %v66, 4
      %v68 = vand.u32 %v66, 15
      %v69 = vsub.s32 0, %v68
      %v70 = vsel %vm64, %v69, %v68
      %vm71 = vcmp.ne.s32.totalorder %v70, 0
      %vm72 = vcmp.lt.s32.totalorder %v70, 0
      %vm73 = vmand %vm72, %vm71
      %v74 = vadd.s32 %v70, 16
      %v75 = vsel %vm73, %v74, %v70
      %v76 = vlaneseq
      %v77 = vshrl.u32 %v76, 7
      %v78 = vadd.s32 %v77, 8
      %vm79 = vcmp.lt.s32.totalorder %v77, 0
      %v80 = vsub.s32 0, %v77
      %v81 = vsel %vm79, %v80, %v77
      %v82 = vshrl.u32 %v81, 4
      %v83 = vand.u32 %v81, 15
      %v84 = vsub.s32 0, %v83
      %v85 = vsel %vm79, %v84, %v83
      %vm86 = vcmp.lt.s32.totalorder %v78, 0
      %v87 = vsub.s32 0, %v78
      %v88 = vsel %vm86, %v87, %v78
      %v89 = vshrl.u32 %v88, 4
      %v90 = vand.u32 %v88, 15
      %v91 = vsub.s32 0, %v90
      %v92 = vsel %vm86, %v91, %v90
      %vm93 = vcmp.ne.s32.totalorder %v85, 0
      %vm94 = vcmp.ne.s32.totalorder %v92, 0
      %vm95 = vcmp.lt.s32.totalorder %v85, 0
      %vm96 = vcmp.lt.s32.totalorder %v92, 0
      %vm97 = vmand %vm95, %vm93
      %vm98 = vmand %vm96, %vm94
      %v99 = vadd.s32 %v85, 16
      %v100 = vadd.s32 %v92, 16
      %v101 = vsel %vm97, %v99, %v85
      %v102 = vsel %vm98, %v100, %v92
      %vm103 = vcmp.ne.s32.totalorder %v75, 15
      %v104 = vsel %vm103, 1, 0
      %v105 = vcvt.s32.f32 %v104
      %106 = vst [vmem:[#allocation4] sm:$0xff] %v105
      %107 = vst [vmem:[#allocation4 + $0x8] sm:$0xff] %v105
      %vm108 = vcmp.ne.s32.totalorder %v75, 0
      %v109 = vsel %vm108, 1, 0
      %v110 = vcvt.s32.f32 %v109
      %111 = vst [vmem:[#allocation5] sm:$0xff] %v110
      %112 = vst [vmem:[#allocation5 + $0x8] sm:$0xff] %v110
      %vm113 = vcmp.ne.s32.totalorder %v101, 0
      %vm114 = vcmp.ne.s32.totalorder %v102, 0
      %v115 = vsel %vm113, 1, 0
      %v116 = vsel %vm114, 1, 0
      %v117 = vcvt.s32.f32 %v115
      %v118 = vcvt.s32.f32 %v116
      %119 = vst [vmem:[#allocation6] sm:$0xff] %v117
      %120 = vst [vmem:[#allocation6 + $0x8] sm:$0xff] %v118
      %vm121 = vcmp.ne.s32.totalorder %v101, 15
      %vm122 = vcmp.ne.s32.totalorder %v102, 15
      %v123 = vsel %vm121, 1, 0
      %v124 = vsel %vm122, 1, 0
      %v125 = vcvt.s32.f32 %v123
      %v126 = vcvt.s32.f32 %v124
      %127 = vst [vmem:[#allocation7] sm:$0xff] %v125
      %128 = vst [vmem:[#allocation7 + $0x8] sm:$0xff] %v126
    $region21: #{tpu_custom_call.1} parent=1 // pred_fallthru
      _
    %v129 = vld [vmem:[#allocation4] sm:$0xff]
    %v130 = vld [vmem:[#allocation4 + $0x8] sm:$0xff]
    %v131 = vld [vmem:[#allocation5] sm:$0xff]
    %v132 = vld [vmem:[#allocation5 + $0x8] sm:$0xff]
    %v133 = vld [vmem:[#allocation6] sm:$0xff]
    %v134 = vld [vmem:[#allocation6 + $0x8] sm:$0xff]
    %v135 = vld [vmem:[#allocation7] sm:$0xff]
    %v136 = vld [vmem:[#allocation7 + $0x8] sm:$0xff]
    %137 = vrot.lane.b32.xlu0 %v52, 127
    %v138 = vpop.permute.xlu0 %137
    %139 = vrot.lane.b32.xlu0 %v53, 127
    %v140 = vpop.permute.xlu0 %139
    %v141 = vmul.f32 %v138, %v129
    %v142 = vmul.f32 %v140, %v130
    %143 = vrot.lane.b32.xlu0 %v52, 1
    %v144 = vpop.permute.xlu0 %143
    %145 = vrot.lane.b32.xlu0 %v53, 1
    %v146 = vpop.permute.xlu0 %145
    %v147 = vmul.f32 %v144, %v131
    %v148 = vmul.f32 %v146, %v132
    %v149 = vrot.slane %v52, 7
    %v150 = vrot.slane %v53, 7
    %v151 = vlaneseq
    %v152 = vshrl.u32 %v151, 7
    %vm153 = vcmp.lt.s32.totalorder %v152, 1
    %v154 = vsel %vm153, %v149, %v150
    %v155 = vsel %vm153, %v150, %v149
    %v156 = vmul.f32 %v155, %v133
    %v157 = vmul.f32 %v154, %v134
    %v158 = vrot.slane %v52, 1
    %v159 = vrot.slane %v53, 1
    %vm160 = vcmp.lt.s32.totalorder %v152, 7
    %v161 = vsel %vm160, %v158, %v159
    %v162 = vsel %vm160, %v159, %v158
    %v163 = vmul.f32 %v161, %v135
    %v164 = vmul.f32 %v162, %v136
    %v165 = vsub.f32 %v141, %v147
    %v166 = vsub.f32 %v142, %v148
    %v167 = vsub.f32 %v156, %v163
    %v168 = vsub.f32 %v157, %v164
    %169 = vrot.lane.b32.xlu0 %v54, 127
    %v170 = vpop.permute.xlu0 %169
    %171 = vrot.lane.b32.xlu0 %v55, 127
    %v172 = vpop.permute.xlu0 %171
    %v173 = vmul.f32 %v170, %v129
    %v174 = vmul.f32 %v172, %v130
    %175 = vrot.lane.b32.xlu0 %v54, 1
    %v176 = vpop.permute.xlu0 %175
    %177 = vrot.lane.b32.xlu0 %v55, 1
    %v178 = vpop.permute.xlu0 %177
    %v179 = vmul.f32 %v176, %v131
    %v180 = vmul.f32 %v178, %v132
    %v181 = vrot.slane %v54, 7
    %v182 = vrot.slane %v55, 7
    %v183 = vsel %vm153, %v181, %v182
    %v184 = vsel %vm153, %v182, %v181
    %v185 = vmul.f32 %v184, %v133
    %v186 = vmul.f32 %v183, %v134
    %v187 = vrot.slane %v54, 1
    %v188 = vrot.slane %v55, 1
    %v189 = vsel %vm160, %v187, %v188
    %v190 = vsel %vm160, %v188, %v187
    %v191 = vmul.f32 %v189, %v135
    %v192 = vmul.f32 %v190, %v136
    %v193 = vsub.f32 %v173, %v179
    %v194 = vsub.f32 %v174, %v180
    %v195 = vsub.f32 %v185, %v191
    %v196 = vsub.f32 %v186, %v192
    %v197 = vsub.f32 %v165, %v193
    %v198 = vsub.f32 %v166, %v194
    %v199 = vmul.f32 %v197, %v197
    %v200 = vmul.f32 %v198, %v198
    %v201 = vadd.f32 %v199, 0.0001
    %v202 = vadd.f32 %v200, 0.0001
    %v203 = vrsqrt.pop %v201
    %v204 = vmul.f32 %v201, %v203
    %vm205 = vcmp.eq.f32.partialorder %v201, inf
    %v206 = vsel %vm205, %v201, %v204
    %vm207 = vcmp.eq.f32.partialorder %v201, 0.0
    %v208 = vand.u32 %v201, 2147483648
    %v209 = vsel %vm207, %v208, %v206
    %v210 = vrsqrt.pop %v202
    %v211 = vmul.f32 %v202, %v210
    %vm212 = vcmp.eq.f32.partialorder %v202, inf
    %v213 = vsel %vm212, %v202, %v211
    %vm214 = vcmp.eq.f32.partialorder %v202, 0.0
    %v215 = vand.u32 %v202, 2147483648
    %v216 = vsel %vm214, %v215, %v213
    %v217 = vsub.f32 %v167, %v195
    %v218 = vsub.f32 %v168, %v196
    %v219 = vmul.f32 %v217, %v217
    %v220 = vmul.f32 %v218, %v218
    %v221 = vadd.f32 %v219, 0.0001
    %v222 = vadd.f32 %v220, 0.0001
    %v223 = vrsqrt.pop %v221
    %v224 = vmul.f32 %v221, %v223
    %vm225 = vcmp.eq.f32.partialorder %v221, inf
    %v226 = vsel %vm225, %v221, %v224
    %vm227 = vcmp.eq.f32.partialorder %v221, 0.0
    %v228 = vand.u32 %v221, 2147483648
    %v229 = vsel %vm227, %v228, %v226
    %v230 = vrsqrt.pop %v222
    %v231 = vmul.f32 %v222, %v230
    %vm232 = vcmp.eq.f32.partialorder %v222, inf
    %v233 = vsel %vm232, %v222, %v231
    %vm234 = vcmp.eq.f32.partialorder %v222, 0.0
    %v235 = vand.u32 %v222, 2147483648
    %v236 = vsel %vm234, %v235, %v233
    %v237 = vadd.f32 %v209, %v229
    %v238 = vadd.f32 %v216, %v236
    %v239 = vmul.f32 %v165, %v165
    %v240 = vmul.f32 %v166, %v166
    %v241 = vadd.f32 %v239, 0.0001
    %v242 = vadd.f32 %v240, 0.0001
    %v243 = vrsqrt.pop %v241
    %v244 = vmul.f32 %v241, %v243
    %vm245 = vcmp.eq.f32.partialorder %v241, inf
    %v246 = vsel %vm245, %v241, %v244
    %vm247 = vcmp.eq.f32.partialorder %v241, 0.0
    %v248 = vand.u32 %v241, 2147483648
    %v249 = vsel %vm247, %v248, %v246
    %v250 = vrsqrt.pop %v242
    %v251 = vmul.f32 %v242, %v250
    %vm252 = vcmp.eq.f32.partialorder %v242, inf
    %v253 = vsel %vm252, %v242, %v251
    %vm254 = vcmp.eq.f32.partialorder %v242, 0.0
    %v255 = vand.u32 %v242, 2147483648
    %v256 = vsel %vm254, %v255, %v253
    %v257 = vmul.f32 %v193, %v193
    %v258 = vmul.f32 %v194, %v194
    %v259 = vadd.f32 %v257, 0.0001
    %v260 = vadd.f32 %v258, 0.0001
    %v261 = vrsqrt.pop %v259
    %v262 = vmul.f32 %v259, %v261
    %vm263 = vcmp.eq.f32.partialorder %v259, inf
    %v264 = vsel %vm263, %v259, %v262
    %vm265 = vcmp.eq.f32.partialorder %v259, 0.0
    %v266 = vand.u32 %v259, 2147483648
    %v267 = vsel %vm265, %v266, %v264
    %v268 = vrsqrt.pop %v260
    %v269 = vmul.f32 %v260, %v268
    %vm270 = vcmp.eq.f32.partialorder %v260, inf
    %v271 = vsel %vm270, %v260, %v269
    %vm272 = vcmp.eq.f32.partialorder %v260, 0.0
    %v273 = vand.u32 %v260, 2147483648
    %v274 = vsel %vm272, %v273, %v271
    %v275 = vadd.f32 %v249, %v267
    %v276 = vadd.f32 %v256, %v274
    %v277 = vmul.f32 %v167, %v167
    %v278 = vmul.f32 %v168, %v168
    %v279 = vadd.f32 %v277, 0.0001
    %v280 = vadd.f32 %v278, 0.0001
    %v281 = vrsqrt.pop %v279
    %v282 = vmul.f32 %v279, %v281
    %vm283 = vcmp.eq.f32.partialorder %v279, inf
    %v284 = vsel %vm283, %v279, %v282
    %vm285 = vcmp.eq.f32.partialorder %v279, 0.0
    %v286 = vand.u32 %v279, 2147483648
    %v287 = vsel %vm285, %v286, %v284
    %v288 = vrsqrt.pop %v280
    %v289 = vmul.f32 %v280, %v288
    %vm290 = vcmp.eq.f32.partialorder %v280, inf
    %v291 = vsel %vm290, %v280, %v289
    %vm292 = vcmp.eq.f32.partialorder %v280, 0.0
    %v293 = vand.u32 %v280, 2147483648
    %v294 = vsel %vm292, %v293, %v291
    %v295 = vadd.f32 %v275, %v287
    %v296 = vadd.f32 %v276, %v294
    %v297 = vmul.f32 %v195, %v195
    %v298 = vmul.f32 %v196, %v196
    %v299 = vadd.f32 %v297, 0.0001
    %v300 = vadd.f32 %v298, 0.0001
    %v301 = vrsqrt.pop %v299
    %v302 = vmul.f32 %v299, %v301
    %vm303 = vcmp.eq.f32.partialorder %v299, inf
    %v304 = vsel %vm303, %v299, %v302
    %vm305 = vcmp.eq.f32.partialorder %v299, 0.0
    %v306 = vand.u32 %v299, 2147483648
    %v307 = vsel %vm305, %v306, %v304
    %v308 = vrsqrt.pop %v300
    %v309 = vmul.f32 %v300, %v308
    %vm310 = vcmp.eq.f32.partialorder %v300, inf
    %v311 = vsel %vm310, %v300, %v309
    %vm312 = vcmp.eq.f32.partialorder %v300, 0.0
    %v313 = vand.u32 %v300, 2147483648
    %v314 = vsel %vm312, %v313, %v311
    %v315 = vadd.f32 %v295, %v307
    %v316 = vadd.f32 %v296, %v314
    %v317 = vld [vmem:[#allocation2] sm:$0xff]
    %v318 = vadd.f32 %v237, %v238
    %v319 = vadd.f32 %v317, %v318
    %320 = vst [vmem:[#allocation2] sm:$0xff] %v319
    %v321 = vld [vmem:[#allocation3] sm:$0xff]
    %v322 = vadd.f32 %v315, %v316
    %v323 = vadd.f32 %v321, %v322
    %324 = vst [vmem:[#allocation3] sm:$0xff] %v323
    // Predicated region
    $region22: #{tpu_custom_call.1} parent=1 // pred_check
      %p325 = pneg %p56
    $region23: #{tpu_custom_call.1} parent=1 // pred_check_branch
      %327 = sbr.rel (%p325) target = $region25
    $region24: #{tpu_custom_call.1} parent=1 // pred_region
      %v328 = vld [vmem:[#allocation2] sm:$0xff]
      %329 = vadd.xlane.f32.xlu0 %v328
      %v330 = vpop.xlane.xlu0 %329
      %v331 = vrot.slane %v330, 4
      %v332 = vadd.f32 %v330, %v331
      %v333 = vrot.slane %v332, 2
      %v334 = vadd.f32 %v332, %v333
      %v335 = vrot.slane %v334, 1
      %v336 = vadd.f32 %v334, %v335
      %s337 = vtos %v336
      %v338 = vld [vmem:[#allocation3] sm:$0xff]
      %339 = vadd.xlane.f32.xlu0 %v338
      %v340 = vpop.xlane.xlu0 %339
      %v341 = vrot.slane %v340, 4
      %v342 = vadd.f32 %v340, %v341
      %v343 = vrot.slane %v342, 2
      %v344 = vadd.f32 %v342, %v343
      %v345 = vrot.slane %v344, 1
      %v346 = vadd.f32 %v344, %v345
      %s347 = vtos %v346
      %vm348 = vcmp.eq.s32.totalorder %v152, 0
      %vm349 = vcmp.eq.s32.totalorder %v152, 1
      %v350 = vstv %s347
      %v351 = vsel %vm349, %v350, 0.0
      %v352 = vstv %s337
      %v353 = vsel %vm348, %v352, %v351
      %354 = vst [vmem:[#allocation13] sm:$0xff] %v353
    $region25: #{tpu_custom_call.1} parent=1 // pred_fallthru
      _
    // Predicated region
    $region26: #{tpu_custom_call.1} parent=1 // pred_check
      _
    $region27: #{tpu_custom_call.1} parent=1 // pred_check_branch
      %356 = sbr.rel (0) target = $region29
    $region28: #{tpu_custom_call.1} parent=1 // pred_region
      %s358 = ssub.s32 128, 128
      %359 = vsyncadd [#allocation10], %s358
      %s361 = sshll.u32 [#allocation13], 4
      %s362 = int_to_ptr.vmem [resolvable:$true] %s361
      %364 = dma.vmem_to_hbm [thread:$0]  %s362, 128, %s2, [#allocation10]
    $region29: #{tpu_custom_call.1} parent=1 // pred_fallthru
      _
    // Predicated region
    $region30: #{tpu_custom_call.1} parent=1 // pred_check
      _
    $region31: #{tpu_custom_call.1} parent=1 // pred_check_branch
      %366 = sbr.rel (0) target = $region33
    $region32: #{tpu_custom_call.1} parent=1 // pred_region
      %367 = dma.done [#allocation10], 128
    $region33: #{tpu_custom_call.1} parent=1 // pred_fallthru
      _
    %368 = vsyncpa [#allocation9], 1
    %369 = vsyncpa [#allocation12], 1
    %370 = vsyncpa [#allocation10], 1

</llo_original>
